<compile_context>
chip_gen: v5e
topology: v5e:2x2
jax: 0.10.0
libtpu: 0.0.40
codegen_flags: <defaults>
</compile_context>

<pallas_src>
import functools

import jax
import jax.numpy as jnp
from jax.experimental import pallas as pl
from jax.experimental.pallas import tpu as pltpu

_EPS = 1e-12        # F.normalize eps
_MASK = -1e30       # finite "minus infinity" for padded key columns / running-max init

# Tile-size candidates, descending.  Capped at 1024: a 1024-row tile already cuts key
# restreaming 4x vs the old 256 default while keeping the f32 (tm, tk) temporaries
# comfortably inside the v7x 64 MiB VMEM.
_TILE_CANDIDATES = (1024, 768, 512, 384, 256, 128, 64, 32, 16, 8)


def _round_up(x, m):
    return (x + m - 1) // m * m


def _pad2(x, rows, cols):
    r, c = x.shape
    if r == rows and c == cols:
        return x
    return jnp.pad(x, ((0, rows - r), (0, cols - c)))


def _normalize_scale_cast(x, scale, dtype):
    """F.normalize(x, dim=-1) * scale in f32, cast once to `dtype`.

    rsqrt(max(||x||^2, eps^2)) == 1 / max(||x||, eps)  (F.normalize semantics).
    NOTE: folding 1/temperature into the scale before a bf16 cast preserves relative
    precision (bf16 rounding is scale-invariant); documented because extreme
    temperatures push values toward the bf16 dynamic-range limits.
    """
    x = x.astype(jnp.float32)
    ssq = jnp.sum(x * x, axis=-1, keepdims=True)
    inv = jax.lax.rsqrt(jnp.maximum(ssq, _EPS * _EPS))
    return (x * (inv * scale)).astype(dtype)


def _online_lse_update(s, m_ref, l_ref):
    """Flash-style running logsumexp over key tiles (f32)."""
    m_prev = m_ref[...]
    m_new = jnp.maximum(m_prev, jnp.max(s, axis=-1, keepdims=True))
    alpha = jnp.exp(m_prev - m_new)
    l_ref[...] = alpha * l_ref[...] + jnp.sum(jnp.exp(s - m_new), axis=-1, keepdims=True)
    m_ref[...] = m_new


# --------------------------------------------------------------------------- #
# negative_keys is None : in-batch negatives, labels = arange(N)
# --------------------------------------------------------------------------- #
def _infonce_self_kernel(q_ref, key_ref, loss_ref, m_ref, l_ref, pos_ref, *,
                         valid_in_last, mask_last):
    i = pl.program_id(0)          # query-row tile ("parallel")
    k = pl.program_id(1)          # key tile (reduction axis, innermost)
    last = pl.num_programs(1) - 1

    @pl.when(k == 0)
    def _init():
        m_ref[...] = jnp.full(m_ref.shape, _MASK, dtype=m_ref.dtype)
        l_ref[...] = jnp.zeros(l_ref.shape, dtype=l_ref.dtype)
        pos_ref[...] = jnp.zeros(pos_ref.shape, dtype=pos_ref.dtype)

    q = q_ref[...]                # pre-normalized, 1/T-scaled in the wrapper
    kn = key_ref[...]             # pre-normalized in the wrapper

    # labels = arange(N): the positive logit is the diagonal, i.e. the row-wise dot
    # of q-tile i with key-tile i (tm == tk so tile (i, i) holds the diagonal).
    @pl.when(k == i)
    def _positive():
        pos_ref[...] = jnp.sum(q.astype(jnp.float32) * kn.astype(jnp.float32),
                               axis=-1, keepdims=True)

    # (tm, tk) logits on the MXU, contracting D of both operands (no transpose).
    s = jax.lax.dot_general(q, kn, (((1,), (1,)), ((), ())),
                            preferred_element_type=jnp.float32)

    if mask_last:
        # Padded key rows only exist in the last key tile: keep the O(tm*tk)
        # iota/where off the steady-state reduction steps.
        @pl.when(k == last)
        def _update_masked():
            col = jax.lax.broadcasted_iota(jnp.int32, s.shape, 1)
            _online_lse_update(jnp.where(col < valid_in_last, s, _MASK), m_ref, l_ref)

        @pl.when(k < last)
        def _update():
            _online_lse_update(s, m_ref, l_ref)
    else:
        _online_lse_update(s, m_ref, l_ref)

    @pl.when(k == last)
    def _finalize():
        # The positive (diagonal) is already inside the LSE stream:
        #   loss_r = logsumexp_r - logits[r, r]
        loss_ref[...] = m_ref[...] + jnp.log(l_ref[...]) - pos_ref[...]


# --------------------------------------------------------------------------- #
# negative_mode='unpaired' : shared negative set, labels = 0
# --------------------------------------------------------------------------- #
def _infonce_unpaired_kernel(q_ref, p_ref, neg_ref, loss_ref, m_ref, l_ref, pos_ref, *,
                             valid_in_last, mask_last):
    k = pl.program_id(1)          # negative-key tile (reduction axis, innermost)
    last = pl.num_programs(1) - 1

    @pl.when(k == 0)
    def _init():
        # positive logit already includes the 1/temperature factor via q.
        pos_ref[...] = jnp.sum(q_ref[...].astype(jnp.float32) *
                               p_ref[...].astype(jnp.float32),
                               axis=-1, keepdims=True)
        m_ref[...] = jnp.full(m_ref.shape, _MASK, dtype=m_ref.dtype)
        l_ref[...] = jnp.zeros(l_ref.shape, dtype=l_ref.dtype)

    s = jax.lax.dot_general(q_ref[...], neg_ref[...], (((1,), (1,)), ((), ())),
                            preferred_element_type=jnp.float32)

    if mask_last:
        @pl.when(k == last)
        def _update_masked():
            col = jax.lax.broadcasted_iota(jnp.int32, s.shape, 1)
            _online_lse_update(jnp.where(col < valid_in_last, s, _MASK), m_ref, l_ref)

        @pl.when(k < last)
        def _update():
            _online_lse_update(s, m_ref, l_ref)
    else:
        _online_lse_update(s, m_ref, l_ref)

    @pl.when(k == last)
    def _finalize():
        # Fold the positive logit into the running (m, l):
        #   loss_r = logsumexp([pos_r, neg_r, ...]) - pos_r
        pos = pos_ref[...]
        m_f = jnp.maximum(m_ref[...], pos)
        l_f = jnp.exp(m_ref[...] - m_f) * l_ref[...] + jnp.exp(pos - m_f)
        loss_ref[...] = m_f + jnp.log(l_f) - pos


# --------------------------------------------------------------------------- #
# Chip-aware VMEM budget and tile selection
# --------------------------------------------------------------------------- #
def _vmem_limit_bytes():
    """~3/4 of physical VMEM: 96 MiB on v5e/v6e, 48 MiB on v7x (safe fallback 48)."""
    cap = 64 * 1024 * 1024
    get_info = getattr(pltpu, "get_tpu_info", None)
    if get_info is not None:
        try:
            cap = int(getattr(get_info(), "vmem_capacity_bytes", cap))
        except Exception:
            pass
    return int(min(cap * 3 // 4, 100 * 1024 * 1024))


def _tile_candidates(full, cap):
    hi = max(8, min(full, cap))
    cands = {hi}
    cands.update(t for t in _TILE_CANDIDATES if t <= hi)
    return sorted(cands, reverse=True)


def _pick_tiles(n_rows, n_keys, d_p, *, row_streams, self_mode, budget,
                block_rows, block_keys, in_bytes):
    """Largest (tm, tk) whose estimated VMEM footprint fits the budget."""

    def est(tm, tk):
        return (row_streams * 2 * tm * d_p * in_bytes    # double-buffered row inputs
                + 2 * tk * d_p * in_bytes                # double-buffered key tile
                + 4 * tm * tk * 4                        # s / exp / mask f32 temporaries
                + 16 * tm * 4)                           # m, l, pos scratch + loss out

    row_full = _round_up(n_rows, 8)
    key_full = _round_up(n_keys, 8)

    if block_rows is not None:
        tm_cands = [max(8, min(_round_up(block_rows, 8), row_full))]
    else:
        # Keep >= 2 row tiles when feasible so the "parallel" axis can shard across
        # both v7x TensorCores; extra grid step is near-free on single-TC chips.
        row_cap = row_full if n_rows < 16 else _round_up(pl.cdiv(n_rows, 2), 8)
        tm_cands = _tile_candidates(row_full, row_cap)

    if self_mode:
        # Diagonal extraction requires tm == tk.
        for tm in tm_cands:
            if est(tm, tm) <= budget:
                return tm, tm
        return tm_cands[-1], tm_cands[-1]

    if block_keys is not None:
        tk_cands = [max(8, min(_round_up(block_keys, 8), key_full))]
    else:
        tk_cands = _tile_candidates(key_full, key_full)

    for tm in tm_cands:              # prioritize tm: it sets the key-restream count
        for tk in tk_cands:
            if est(tm, tk) <= budget:
                return tm, tk
    return tm_cands[-1], tk_cands[-1]


# --------------------------------------------------------------------------- #
# Wrapper
# --------------------------------------------------------------------------- #
def infonce_loss(query, positive_key, negative_keys=None, *,
                 temperature=0.1, reduction='mean',
                 mxu_dtype=jnp.bfloat16, block_rows=None, block_keys=None):
    """Pallas TPU implementation of the InfoNCE forward pass.

    block_rows / block_keys override the auto tile picker (block_keys is ignored in
    self mode, where the diagonal trick needs matching row/key tiles).
    """
    if query.ndim != 2 or positive_key.ndim != 2:
        raise ValueError('<query> and <positive_key> must have 2 dimensions.')
    if query.shape[0] != positive_key.shape[0]:
        raise ValueError('<query> and <positive_key> must have the same number of samples.')
    if query.shape[-1] != positive_key.shape[-1]:
        raise ValueError('<query> and <positive_key> must have the same embedding size.')
    if negative_keys is not None and negative_keys.ndim == 3:
        # TODO(synk): negative_mode='paired' ((N, M, D) negatives) needs a batched-matmul kernel.
        raise NotImplementedError("negative_mode='paired' is not implemented.")
    if negative_keys is not None:
        if negative_keys.ndim != 2:
            raise ValueError("<negative_keys> must have 2 dimensions for negative_mode='unpaired'.")
        if query.shape[-1] != negative_keys.shape[-1]:
            raise ValueError('<query> and <negative_keys> must have the same embedding size.')

    n_rows, d = query.shape
    # Lane-dense D; the pad fuses with the wrapper normalize/cast pass (no extra HBM
    # round trip).  TODO(synk): evaluate streaming unpadded D (block == full dim).
    d_p = _round_up(d, 128)

    inv_t = 1.0 / float(temperature)
    vmem_limit = _vmem_limit_bytes()
    tile_budget = int(vmem_limit * 0.7)      # headroom for compiler temporaries
    in_bytes = jnp.dtype(mxu_dtype).itemsize

    # Pre-normalize (f32 math), fold 1/T into q, cast ONCE to the MXU dtype: keys are
    # no longer re-normalized / re-streamed in f32 for every row tile.
    qn = _normalize_scale_cast(query, inv_t, mxu_dtype)

    if negative_keys is None:
        tm, tk = _pick_tiles(n_rows, n_rows, d_p, row_streams=1, self_mode=True,
                             budget=tile_budget, block_rows=block_rows,
                             block_keys=block_keys, in_bytes=in_bytes)
        n_rows_p = _round_up(n_rows, tm)
        n_keys, n_keys_p = n_rows, n_rows_p          # tm == tk -> same padding
        kn = _normalize_scale_cast(positive_key, 1.0, mxu_dtype)
        args = (_pad2(qn, n_rows_p, d_p), _pad2(kn, n_keys_p, d_p))
        grid = (n_rows_p // tm, n_keys_p // tk)
        kernel = functools.partial(
            _infonce_self_kernel,
            valid_in_last=n_keys - (grid[1] - 1) * tk,
            mask_last=(n_keys_p != n_keys))
        in_specs = [pl.BlockSpec((tm, d_p), lambda i, k: (i, 0)),
                    pl.BlockSpec((tk, d_p), lambda i, k: (k, 0))]
    else:
        n_neg = negative_keys.shape[0]
        tm, tk = _pick_tiles(n_rows, n_neg, d_p, row_streams=2, self_mode=False,
                             budget=tile_budget, block_rows=block_rows,
                             block_keys=block_keys, in_bytes=in_bytes)
        n_rows_p = _round_up(n_rows, tm)
        n_keys, n_keys_p = n_neg, _round_up(n_neg, tk)
        pn = _normalize_scale_cast(positive_key, 1.0, mxu_dtype)
        nn = _normalize_scale_cast(negative_keys, 1.0, mxu_dtype)
        args = (_pad2(qn, n_rows_p, d_p), _pad2(pn, n_rows_p, d_p),
                _pad2(nn, n_keys_p, d_p))
        grid = (n_rows_p // tm, n_keys_p // tk)
        kernel = functools.partial(
            _infonce_unpaired_kernel,
            valid_in_last=n_keys - (grid[1] - 1) * tk,
            mask_last=(n_keys_p != n_keys))
        in_specs = [pl.BlockSpec((tm, d_p), lambda i, k: (i, 0)),
                    pl.BlockSpec((tm, d_p), lambda i, k: (i, 0)),
                    pl.BlockSpec((tk, d_p), lambda i, k: (k, 0))]

    out_shape = jax.ShapeDtypeStruct((n_rows_p, 1), jnp.float32)
    out_specs = pl.BlockSpec((tm, 1), lambda i, k: (i, 0))
    scratch = [pltpu.VMEM((tm, 1), jnp.float32),     # running max m_i
               pltpu.VMEM((tm, 1), jnp.float32),     # running sum l_i
               pltpu.VMEM((tm, 1), jnp.float32)]     # positive logit

    key_bytes = args[-1].size * args[-1].dtype.itemsize
    rowwise_bytes = sum(a.size * a.dtype.itemsize for a in args[:-1])
    cost = pl.CostEstimate(
        flops=int(2 * n_rows_p * n_keys_p * d_p),
        transcendentals=int(n_rows_p * n_keys_p + 4 * n_rows_p),
        bytes_accessed=int(rowwise_bytes + grid[0] * key_bytes + 4 * n_rows_p))

    out = pl.pallas_call(
        kernel,
        out_shape=out_shape,
        grid_spec=pltpu.PrefetchScalarGridSpec(
            num_scalar_prefetch=0,
            grid=grid,
            in_specs=in_specs,
            out_specs=out_specs,
            scratch_shapes=scratch),
        compiler_params=pltpu.CompilerParams(
            dimension_semantics=("parallel", "arbitrary"),
            vmem_limit_bytes=vmem_limit),
        cost_estimate=cost,
    )(*args)

    per_row = out[:n_rows, 0]
    if reduction == 'mean':
        return jnp.mean(per_row)
    if reduction == 'sum':
        return jnp.sum(per_row)
    if reduction == 'none':
        return per_row
    raise ValueError(f"Unknown reduction: {reduction}")


# --------------------------------------------------------------------------- #
# Pure-JAX reference (correctness check only)
# --------------------------------------------------------------------------- #
def _ref_infonce(query, positive_key, negative_keys=None, temperature=0.1, reduction='mean'):
    def norm(x):
        n = jnp.sqrt(jnp.sum(x * x, axis=-1, keepdims=True))
        return x / jnp.maximum(n, _EPS)

    qn = norm(query.astype(jnp.float32))
    pn = norm(positive_key.astype(jnp.float32))
    if negative_keys is None:
        logits = jnp.dot(qn, pn.T, precision=jax.lax.Precision.HIGHEST) / temperature
        labels = jnp.arange(logits.shape[0])
    else:
        nn = norm(negative_keys.astype(jnp.float32))
        pos = jnp.sum(qn * pn, axis=-1, keepdims=True)
        neg = jnp.dot(qn, nn.T, precision=jax.lax.Precision.HIGHEST)
        logits = jnp.concatenate([pos, neg], axis=1) / temperature
        labels = jnp.zeros(logits.shape[0], dtype=jnp.int32)
    lse = jax.scipy.special.logsumexp(logits, axis=-1)
    picked = jnp.take_along_axis(logits, labels[:, None], axis=1)[:, 0]
    per_row = lse - picked
    if reduction == 'mean':
        return jnp.mean(per_row)
    if reduction == 'sum':
        return jnp.sum(per_row)
    return per_row


if __name__ == "__main__":
    key = jax.random.PRNGKey(0)
    k1, k2, k3, k4, k5, k6 = jax.random.split(key, 6)

    # --- module's example shapes: batch=32, num_negative=48, embedding=128 ---
    N, M, D = 32, 48, 128
    query = jax.random.normal(k1, (N, D), dtype=jnp.float32)
    positive_key = jax.random.normal(k2, (N, D), dtype=jnp.float32)
    negative_keys = jax.random.normal(k3, (M, D), dtype=jnp.float32)

    ref_unpaired = _ref_infonce(query, positive_key, negative_keys, 0.1)
    ref_self = _ref_infonce(query, positive_key, None, 0.1)

    # bf16 MXU fast path (logits slightly perturbed by bf16 rounding)
    loss_unpaired = jax.block_until_ready(
        infonce_loss(query, positive_key, negative_keys, temperature=0.1))
    loss_self = jax.block_until_ready(
        infonce_loss(query, positive_key, None, temperature=0.1))
    assert jnp.allclose(loss_unpaired, ref_unpaired, atol=1e-1, rtol=5e-2), (loss_unpaired, ref_unpaired)
    assert jnp.allclose(loss_self, ref_self, atol=1e-1, rtol=5e-2), (loss_self, ref_self)

    # f32 validation path (tighter tolerance)
    loss_unpaired_f32 = jax.block_until_ready(
        infonce_loss(query, positive_key, negative_keys, temperature=0.1, mxu_dtype=jnp.float32))
    loss_self_f32 = jax.block_until_ready(
        infonce_loss(query, positive_key, None, temperature=0.1, mxu_dtype=jnp.float32))
    assert jnp.allclose(loss_unpaired_f32, ref_unpaired, atol=2e-2, rtol=1e-2), (loss_unpaired_f32, ref_unpaired)
    assert jnp.allclose(loss_self_f32, ref_self, atol=2e-2, rtol=1e-2), (loss_self_f32, ref_self)

    # --- unaligned shapes + small forced tiles: exercises padding, the last-key-tile
    #     mask, the multi-tile online LSE, and the k == i diagonal tile selection ---
    N2, M2, D2 = 72, 200, 96
    q2 = jax.random.normal(k4, (N2, D2), dtype=jnp.float32)
    p2 = jax.random.normal(k5, (N2, D2), dtype=jnp.float32)
    n2 = jax.random.normal(k6, (M2, D2), dtype=jnp.float32)

    ref_u2 = _ref_infonce(q2, p2, n2, 0.1)
    ref_s2 = _ref_infonce(q2, p2, None, 0.1)

    got_u2 = jax.block_until_ready(
        infonce_loss(q2, p2, n2, temperature=0.1, mxu_dtype=jnp.float32,
                     block_rows=32, block_keys=64))
    got_s2 = jax.block_until_ready(
        infonce_loss(q2, p2, None, temperature=0.1, mxu_dtype=jnp.float32,
                     block_rows=32, block_keys=64))
    assert jnp.allclose(got_u2, ref_u2, atol=2e-2, rtol=1e-2), (got_u2, ref_u2)
    assert jnp.allclose(got_s2, ref_s2, atol=2e-2, rtol=1e-2), (got_s2, ref_s2)

    # auto-tiled bf16 path on the unaligned shapes
    got_u2_bf16 = jax.block_until_ready(infonce_loss(q2, p2, n2, temperature=0.1))
    got_s2_bf16 = jax.block_until_ready(infonce_loss(q2, p2, None, temperature=0.1))
    assert jnp.allclose(got_u2_bf16, ref_u2, atol=1e-1, rtol=5e-2), (got_u2_bf16, ref_u2)
    assert jnp.allclose(got_s2_bf16, ref_s2, atol=1e-1, rtol=5e-2), (got_s2_bf16, ref_s2)

    print("KERNEL_OK")
</pallas_src>

<mosaic_0001>
module attributes {stable_mosaic.version = 11 : i64} {
  func.func @_infonce_unpaired_kernel(%arg0: i32, %arg1: i32, %arg2: memref<16x128xbf16, #tpu.memory_space<vmem>>, %arg3: memref<16x128xbf16, #tpu.memory_space<vmem>>, %arg4: memref<48x128xbf16, #tpu.memory_space<vmem>>, %arg5: memref<16x1xf32, #tpu.memory_space<vmem>>, %arg6: memref<16x1xf32, #tpu.memory_space<vmem>>, %arg7: memref<16x1xf32, #tpu.memory_space<vmem>>, %arg8: memref<16x1xf32, #tpu.memory_space<vmem>>) attributes {dimension_semantics = [#tpu.dimension_semantics<parallel>, #tpu.dimension_semantics<arbitrary>], iteration_bounds = array<i64: 2, 1>, scalar_prefetch = 0 : i64, scratch_operands = 3 : i64, tpu.core_type = #tpu.core_type<tc>, window_params = [{transform_indices = @transform_0, window_bounds = array<i64: 16, 128>}, {transform_indices = @transform_1, window_bounds = array<i64: 16, 128>}, {transform_indices = @transform_2, window_bounds = array<i64: 48, 128>}, {transform_indices = @transform_3, window_bounds = array<i64: 16, 1>}]} {
    %c0_i32 = arith.constant 0 : i32
    %0 = arith.cmpi eq, %arg1, %c0_i32 : i32
    %1 = arith.extui %0 : i1 to i32
    %c0_i32_0 = arith.constant 0 : i32
    %2 = arith.cmpi ne, %1, %c0_i32_0 : i32
    scf.if %2 {
      %c0_16 = arith.constant 0 : index
      %c0_17 = arith.constant 0 : index
      %25 = vector.load %arg2[%c0_16, %c0_17] : memref<16x128xbf16, #tpu.memory_space<vmem>>, vector<16x128xbf16>
      %26 = arith.extf %25 : vector<16x128xbf16> to vector<16x128xf32>
      %c0_18 = arith.constant 0 : index
      %c0_19 = arith.constant 0 : index
      %27 = vector.load %arg3[%c0_18, %c0_19] : memref<16x128xbf16, #tpu.memory_space<vmem>>, vector<16x128xbf16>
      %28 = arith.extf %27 : vector<16x128xbf16> to vector<16x128xf32>
      %29 = arith.mulf %26, %28 : vector<16x128xf32>
      %cst_20 = arith.constant dense<0.000000e+00> : vector<16xf32>
      %30 = vector.multi_reduction <add>, %29, %cst_20 [1] : vector<16x128xf32> to vector<16xf32>
      %31 = vector.shape_cast %30 : vector<16xf32> to vector<16x1xf32>
      %c0_21 = arith.constant 0 : index
      %c0_22 = arith.constant 0 : index
      %32 = vector.load %arg8[%c0_21, %c0_22] : memref<16x1xf32, #tpu.memory_space<vmem>>, vector<16x1xf32>
      tpu.vector_store %arg8[%c0_21, %c0_22], %31 {strides = array<i32>} : memref<16x1xf32, #tpu.memory_space<vmem>>, vector<16x1xf32>,
      %cst_23 = arith.constant -1.000000e+30 : f32
      %33 = vector.broadcast %cst_23 : f32 to vector<16x1xf32>
      %c0_24 = arith.constant 0 : index
      %c0_25 = arith.constant 0 : index
      %34 = vector.load %arg6[%c0_24, %c0_25] : memref<16x1xf32, #tpu.memory_space<vmem>>, vector<16x1xf32>
      tpu.vector_store %arg6[%c0_24, %c0_25], %33 {strides = array<i32>} : memref<16x1xf32, #tpu.memory_space<vmem>>, vector<16x1xf32>,
      %cst_26 = arith.constant 0.000000e+00 : f32
      %35 = vector.broadcast %cst_26 : f32 to vector<16x1xf32>
      %c0_27 = arith.constant 0 : index
      %c0_28 = arith.constant 0 : index
      %36 = vector.load %arg7[%c0_27, %c0_28] : memref<16x1xf32, #tpu.memory_space<vmem>>, vector<16x1xf32>
      tpu.vector_store %arg7[%c0_27, %c0_28], %35 {strides = array<i32>} : memref<16x1xf32, #tpu.memory_space<vmem>>, vector<16x1xf32>,
    } else {
    }
    %c0 = arith.constant 0 : index
    %c0_1 = arith.constant 0 : index
    %3 = vector.load %arg2[%c0, %c0_1] : memref<16x128xbf16, #tpu.memory_space<vmem>>, vector<16x128xbf16>
    %c0_2 = arith.constant 0 : index
    %c0_3 = arith.constant 0 : index
    %4 = vector.load %arg4[%c0_2, %c0_3] : memref<48x128xbf16, #tpu.memory_space<vmem>>, vector<48x128xbf16>
    %cst = arith.constant dense<0.000000e+00> : vector<16x48xf32>
    %5 = tpu.matmul %3, %4, %cst {dimension_numbers = #tpu.dot_dimension_numbers<[1], [1], [0], [0], [0, 0, 1, 0], [], []>} : vector<16x128xbf16>, vector<48x128xbf16>, vector<16x48xf32> -> vector<16x48xf32>
    %c0_4 = arith.constant 0 : index
    %c0_5 = arith.constant 0 : index
    %6 = vector.load %arg6[%c0_4, %c0_5] : memref<16x1xf32, #tpu.memory_space<vmem>>, vector<16x1xf32>
    %cst_6 = arith.constant dense<0xFF800000> : vector<16xf32>
    %7 = vector.multi_reduction <maximumf>, %5, %cst_6 [1] : vector<16x48xf32> to vector<16xf32>
    %8 = vector.shape_cast %7 : vector<16xf32> to vector<16x1xf32>
    %9 = arith.maximumf %6, %8 : vector<16x1xf32>
    %10 = arith.subf %6, %9 : vector<16x1xf32>
    %11 = math.exp %10 : vector<16x1xf32>
    %c0_7 = arith.constant 0 : index
    %c0_8 = arith.constant 0 : index
    %12 = vector.load %arg7[%c0_7, %c0_8] : memref<16x1xf32, #tpu.memory_space<vmem>>, vector<16x1xf32>
    %13 = arith.mulf %11, %12 : vector<16x1xf32>
    %14 = vector.broadcast %9 : vector<16x1xf32> to vector<16x48xf32>
    %15 = arith.subf %5, %14 : vector<16x48xf32>
    %16 = math.exp %15 : vector<16x48xf32>
    %cst_9 = arith.constant dense<0.000000e+00> : vector<16xf32>
    %17 = vector.multi_reduction <add>, %16, %cst_9 [1] : vector<16x48xf32> to vector<16xf32>
    %18 = vector.shape_cast %17 : vector<16xf32> to vector<16x1xf32>
    %19 = arith.addf %13, %18 : vector<16x1xf32>
    %c0_10 = arith.constant 0 : index
    %c0_11 = arith.constant 0 : index
    %20 = vector.load %arg7[%c0_10, %c0_11] : memref<16x1xf32, #tpu.memory_space<vmem>>, vector<16x1xf32>
    tpu.vector_store %arg7[%c0_10, %c0_11], %19 {strides = array<i32>} : memref<16x1xf32, #tpu.memory_space<vmem>>, vector<16x1xf32>,
    %c0_12 = arith.constant 0 : index
    %c0_13 = arith.constant 0 : index
    %21 = vector.load %arg6[%c0_12, %c0_13] : memref<16x1xf32, #tpu.memory_space<vmem>>, vector<16x1xf32>
    tpu.vector_store %arg6[%c0_12, %c0_13], %9 {strides = array<i32>} : memref<16x1xf32, #tpu.memory_space<vmem>>, vector<16x1xf32>,
    %c0_i32_14 = arith.constant 0 : i32
    %22 = arith.cmpi eq, %arg1, %c0_i32_14 : i32
    %23 = arith.extui %22 : i1 to i32
    %c0_i32_15 = arith.constant 0 : i32
    %24 = arith.cmpi ne, %23, %c0_i32_15 : i32
    scf.if %24 {
      %c0_16 = arith.constant 0 : index
      %c0_17 = arith.constant 0 : index
      %25 = vector.load %arg8[%c0_16, %c0_17] : memref<16x1xf32, #tpu.memory_space<vmem>>, vector<16x1xf32>
      %c0_18 = arith.constant 0 : index
      %c0_19 = arith.constant 0 : index
      %26 = vector.load %arg6[%c0_18, %c0_19] : memref<16x1xf32, #tpu.memory_space<vmem>>, vector<16x1xf32>
      %27 = arith.maximumf %26, %25 : vector<16x1xf32>
      %c0_20 = arith.constant 0 : index
      %c0_21 = arith.constant 0 : index
      %28 = vector.load %arg6[%c0_20, %c0_21] : memref<16x1xf32, #tpu.memory_space<vmem>>, vector<16x1xf32>
      %29 = arith.subf %28, %27 : vector<16x1xf32>
      %30 = math.exp %29 : vector<16x1xf32>
      %c0_22 = arith.constant 0 : index
      %c0_23 = arith.constant 0 : index
      %31 = vector.load %arg7[%c0_22, %c0_23] : memref<16x1xf32, #tpu.memory_space<vmem>>, vector<16x1xf32>
      %32 = arith.mulf %30, %31 : vector<16x1xf32>
      %33 = arith.subf %25, %27 : vector<16x1xf32>
      %34 = math.exp %33 : vector<16x1xf32>
      %35 = arith.addf %32, %34 : vector<16x1xf32>
      %36 = math.log %35 : vector<16x1xf32>
      %37 = arith.addf %27, %36 : vector<16x1xf32>
      %38 = arith.subf %37, %25 : vector<16x1xf32>
      %c0_24 = arith.constant 0 : index
      %c0_25 = arith.constant 0 : index
      %39 = vector.load %arg5[%c0_24, %c0_25] : memref<16x1xf32, #tpu.memory_space<vmem>>, vector<16x1xf32>
      tpu.vector_store %arg5[%c0_24, %c0_25], %38 {strides = array<i32>} : memref<16x1xf32, #tpu.memory_space<vmem>>, vector<16x1xf32>,
    } else {
    }
    return
  }
  func.func @transform_0(%arg0: i32, %arg1: i32) -> (i32, i32) {
    %c0_i32 = arith.constant 0 : i32
    %c0_i32_0 = arith.constant 0 : i32
    return %arg0, %c0_i32 : i32, i32
  }
  func.func @transform_1(%arg0: i32, %arg1: i32) -> (i32, i32) {
    %c0_i32 = arith.constant 0 : i32
    %c0_i32_0 = arith.constant 0 : i32
    return %arg0, %c0_i32 : i32, i32
  }
  func.func @transform_2(%arg0: i32, %arg1: i32) -> (i32, i32) {
    %c0_i32 = arith.constant 0 : i32
    %c0_i32_0 = arith.constant 0 : i32
    return %arg1, %c0_i32 : i32, i32
  }
  func.func @transform_3(%arg0: i32, %arg1: i32) -> (i32, i32) {
    %c0_i32 = arith.constant 0 : i32
    %c0_i32_0 = arith.constant 0 : i32
    return %arg0, %c0_i32 : i32, i32
  }
}

</mosaic_0001>

<llo_original>
// kernel: tpu_custom_call.1
$region0: #{tpu_custom_call.1}
  #allocation0 [shape = 'u32[]', space=smem, size = 0x4, offset = 0x4, fixed_abs, tag = 'smem constant byte address 0x4 - core index']
  #allocation1 [shape = 'u32[72,128]{1,0:T(1,128)}', space=vmem, size = 0x9000, scoped, tag = 'internal scratch']
  #allocation2 [shape = 'f32[16,1]{1,0:T(8,128)}', space=vmem, size = 0x2000, scoped, tag = 'scratch operand']
  #allocation3 [shape = 'f32[16,1]{1,0:T(8,128)}', space=vmem, size = 0x2000, scoped, tag = 'scratch operand']
  #allocation4 [shape = 'f32[16,1]{1,0:T(8,128)}', space=vmem, size = 0x2000, scoped, tag = 'scratch operand']
  %s0 = inlined_call_operand.hbm [shape: bf16[32,128], index: 0, kind: input, shape index: {}]
  %s1 = inlined_call_operand.hbm [shape: bf16[32,128], index: 1, kind: input, shape index: {}]
  %s2 = inlined_call_operand.hbm [shape: bf16[48,128], index: 2, kind: input, shape index: {}]
  %s3 = inlined_call_operand.vmem [shape: f32[32,1], index: 3, kind: output, shape index: {}]
  %s4 = sld [smem:[#allocation0]]
  $region65: #{tpu_custom_call.1} parent=0
    _
  %s6 = ssub.s32 1, %s4
  %s7 = scalar_select 0, %s6, %s4
  $region1: #{tpu_custom_call.1} parent=0
    #allocation5 [shape = 'u8[8192]{0}', space=vmem, size = 0x2000, scoped, tag = 'input window, operand 0']
    #allocation6 [shape = 's32[2]{0}', space=sflag, size = 0x8, scoped, tag = 'scoped memory for tpu_custom_call.1']
    #allocation7 [shape = 'u8[8192]{0}', space=vmem, size = 0x2000, scoped, tag = 'input window, operand 1']
    #allocation8 [shape = 's32[2]{0}', space=sflag, size = 0x8, scoped, tag = 'scoped memory for tpu_custom_call.1']
    #allocation9 [shape = 'u8[12288]{0}', space=vmem, size = 0x3000, scoped, tag = 'input window, operand 2, single buffered']
    %8 = vsyncpa [#allocation6], 0
    %s9 = scalar_lea.sflag [#allocation6], 1
    %10 = vsyncpa %s9, 0
    %11 = vsyncpa [#allocation8], 0
    %s12 = scalar_lea.sflag [#allocation8], 1
    %13 = vsyncpa %s12, 0
    loop: start=0, step=1, limit=4
    $region2: #{tpu_custom_call.1} parent=1 // loop_pre_header
      _
    $region3: #{tpu_custom_call.1} parent=1 // loop_header
      %s15 = sphi 0, %s19
      %p16 = scmp.ge.s32.totalorder %s15, 4
      %s22 = sphi 0, %s34
      %s23 = sphi 0, %s30
      %s24 = sphi 0, %s22
      %s25 = sphi 0, %s23
      %s26 = sphi 0, %s24
      %s27 = sphi 0, %s25
      %s37 = sphi 0, %s39
      %s40 = sphi 0, %s37
      %s41 = sphi 0, %s40
      %s57 = sphi 0, %s41
      %s63 = sphi 0, %s65
      %s66 = sphi 0, %s63
      %s67 = sphi 0, %s66
      %s83 = sphi 0, %s67
      %s89 = sphi 0, %s91
      %s92 = sphi 0, %s89
      %s93 = sphi 0, %s92
      %s109 = sphi 0, %s93
      %s115 = sphi 0, %s117
      %s118 = sphi 0, %s115
      %s119 = sphi 0, %s118
      %s135 = sphi 0, %s119
    $region4: #{tpu_custom_call.1} parent=1 // loop_header_branch
      %18 = sbr.rel (%p16) target = $region8
    $region5: #{tpu_custom_call.1} parent=1 // loop_body
      %s20 = ssub.s32 %s15, 1
      %s21 = ssub.s32 %s15, 2
      %s28 = sadd.s32 1, %s23
      %p29 = scmp.ge.s32.totalorder %s28, 1
      %s30 = scalar_select %p29, 0, %s28
      %s31 = sadd.s32 1, %s22
      %s32 = scalar_select %p29, %s31, %s22
      %p33 = scmp.ge.s32.totalorder %s32, 2
      %s34 = scalar_select %p33, 0, %s32
      %s35 = ssub.s32 %s22, %s34
      %p36 = scmp.eq.s32.totalorder %s35, 0
      %s38 = sadd.s32 %s37, 1
      %s39 = scalar_select %p36, %s37, %s38
      %p42 = pneg %p36
      %p43 = scmp.eq.s32.totalorder %s15, 1
      %p44 = por %p42, %p43
      %p45 = scmp.ne.s32.totalorder %s37, %s40
      %p46 = scmp.eq.s32.totalorder %s15, 0
      %p47 = por %p45, %p46
      %p48 = scmp.ne.s32.totalorder %s37, %s40
      %p49 = scmp.eq.s32.totalorder %s20, 1
      %p50 = por %p48, %p49
      %p51 = scmp.ne.s32.totalorder %s40, %s41
      %p52 = scmp.eq.s32.totalorder %s20, 0
      %p53 = por %p51, %p52
      %p54 = scmp.ne.s32.totalorder %s40, %s41
      %p55 = scmp.eq.s32.totalorder %s21, 1
      %p56 = por %p54, %p55
      %p58 = scmp.ne.s32.totalorder %s41, %s57
      %p59 = scmp.eq.s32.totalorder %s21, 0
      %p60 = por %p58, %p59
      %s61 = ssub.s32 %s22, %s34
      %p62 = scmp.eq.s32.totalorder %s61, 0
      %s64 = sadd.s32 %s63, 1
      %s65 = scalar_select %p62, %s63, %s64
      %p68 = pneg %p62
      %p69 = scmp.eq.s32.totalorder %s15, 1
      %p70 = por %p68, %p69
      %p71 = scmp.ne.s32.totalorder %s63, %s66
      %p72 = scmp.eq.s32.totalorder %s15, 0
      %p73 = por %p71, %p72
      %p74 = scmp.ne.s32.totalorder %s63, %s66
      %p75 = scmp.eq.s32.totalorder %s20, 1
      %p76 = por %p74, %p75
      %p77 = scmp.ne.s32.totalorder %s66, %s67
      %p78 = scmp.eq.s32.totalorder %s20, 0
      %p79 = por %p77, %p78
      %p80 = scmp.ne.s32.totalorder %s66, %s67
      %p81 = scmp.eq.s32.totalorder %s21, 1
      %p82 = por %p80, %p81
      %p84 = scmp.ne.s32.totalorder %s67, %s83
      %p85 = scmp.eq.s32.totalorder %s21, 0
      %p86 = por %p84, %p85
      %s87 = ssub.s32 %s23, %s30
      %p88 = scmp.eq.s32.totalorder %s87, 0
      %s90 = sadd.s32 %s89, 1
      %s91 = scalar_select %p88, %s89, %s90
      %p94 = pneg %p88
      %p95 = scmp.eq.s32.totalorder %s15, 1
      %p96 = por %p94, %p95
      %p97 = scmp.ne.s32.totalorder %s89, %s92
      %p98 = scmp.eq.s32.totalorder %s15, 0
      %p99 = por %p97, %p98
      %p100 = scmp.ne.s32.totalorder %s89, %s92
      %p101 = scmp.eq.s32.totalorder %s20, 1
      %p102 = por %p100, %p101
      %p103 = scmp.ne.s32.totalorder %s92, %s93
      %p104 = scmp.eq.s32.totalorder %s20, 0
      %p105 = por %p103, %p104
      %p106 = scmp.ne.s32.totalorder %s92, %s93
      %p107 = scmp.eq.s32.totalorder %s21, 1
      %p108 = por %p106, %p107
      %p110 = scmp.ne.s32.totalorder %s93, %s109
      %p111 = scmp.eq.s32.totalorder %s21, 0
      %p112 = por %p110, %p111
      %s113 = ssub.s32 %s22, %s34
      %p114 = scmp.eq.s32.totalorder %s113, 0
      %s116 = sadd.s32 %s115, 1
      %s117 = scalar_select %p114, %s115, %s116
      %p120 = pneg %p114
      %p121 = scmp.eq.s32.totalorder %s15, 1
      %p122 = por %p120, %p121
      %p123 = scmp.ne.s32.totalorder %s115, %s118
      %p124 = scmp.eq.s32.totalorder %s15, 0
      %p125 = por %p123, %p124
      %p126 = scmp.ne.s32.totalorder %s115, %s118
      %p127 = scmp.eq.s32.totalorder %s20, 1
      %p128 = por %p126, %p127
      %p129 = scmp.ne.s32.totalorder %s118, %s119
      %p130 = scmp.eq.s32.totalorder %s20, 0
      %p131 = por %p129, %p130
      %p132 = scmp.ne.s32.totalorder %s118, %s119
      %p133 = scmp.eq.s32.totalorder %s21, 1
      %p134 = por %p132, %p133
      %p136 = scmp.ne.s32.totalorder %s119, %s135
      %p137 = scmp.eq.s32.totalorder %s21, 0
      %p138 = por %p136, %p137
      %p139 = scmp.le.s32.totalorder 1, %s15
      %p140 = scmp.lt.s32.totalorder %s15, 3
      %p141 = pnand %p139, %p140
      %p142 = pneg %p141
      // Predicated region
      $region9: #{tpu_custom_call.1} parent=5 // pred_check
        _
      $region10: #{tpu_custom_call.1} parent=5 // pred_check_branch
        %144 = sbr.rel (%p141) target = $region12
      $region11: #{tpu_custom_call.1} parent=5 // pred_region
        %s145 = ssub.s32 %s15, 1
        // Predicated region
        $region13: #{tpu_custom_call.1} parent=11 // pred_check
          %p146 = pneg %p105
        $region14: #{tpu_custom_call.1} parent=11 // pred_check_branch
          %148 = sbr.rel (%p146) target = $region16
        $region15: #{tpu_custom_call.1} parent=11 // pred_region
          %s149 = smul.u32 6, %s25
          %151 = vsyncadd [#allocation8], 0
          %s152 = smul.addr %s149, 4
          %s153 = scalar_lea.hbm %s2, %s152
          %s154 = sshll.u32 %s153, 4
          %s155 = int_to_ptr.hbm [resolvable:$true] %s154
          %s156 = sshll.u32 [#allocation9], 4
          %s157 = int_to_ptr.vmem [resolvable:$true] %s156
          %162 = dma.hbm_to_vmem [thread:$0]  %s155, 384, %s157, [#allocation8], 64, 64, 4
        $region16: #{tpu_custom_call.1} parent=11 // pred_fallthru
          _
      $region12: #{tpu_custom_call.1} parent=5 // pred_fallthru
        _
      %p163 = scmp.lt.s32.totalorder %s15, 2
      // Predicated region
      $region17: #{tpu_custom_call.1} parent=5 // pred_check
        %p164 = pneg %p163
      $region18: #{tpu_custom_call.1} parent=5 // pred_check_branch
        %166 = sbr.rel (%p164) target = $region20
      $region19: #{tpu_custom_call.1} parent=5 // pred_region
        // Predicated region
        $region21: #{tpu_custom_call.1} parent=19 // pred_check
          %p167 = pneg %p47
        $region22: #{tpu_custom_call.1} parent=19 // pred_check_branch
          %169 = sbr.rel (%p167) target = $region24
        $region23: #{tpu_custom_call.1} parent=19 // pred_region
          %s170 = sand.u32 %s37, 1
          %s171 = scalar_lea.sflag [#allocation6], %s170
          %s172 = sand.u32 %s37, 1
          %s173 = smul.addr %s172, 8
          %s174 = scalar_lea.vmem [#allocation5], %s173
          %s175 = smul.u32 2, %s22
          %177 = vsyncadd %s171, 0
          %s178 = smul.addr %s175, 4
          %s179 = scalar_lea.hbm %s0, %s178
          %s180 = sshll.u32 %s179, 4
          %s181 = int_to_ptr.hbm [resolvable:$true] %s180
          %s182 = sshll.u32 %s174, 4
          %s183 = int_to_ptr.vmem [resolvable:$true] %s182
          %188 = dma.hbm_to_vmem [thread:$0]  %s181, 128, %s183, %s171, 64, 64, 4
        $region24: #{tpu_custom_call.1} parent=19 // pred_fallthru
          _
        // Predicated region
        $region25: #{tpu_custom_call.1} parent=19 // pred_check
          %p189 = pneg %p73
        $region26: #{tpu_custom_call.1} parent=19 // pred_check_branch
          %191 = sbr.rel (%p189) target = $region28
        $region27: #{tpu_custom_call.1} parent=19 // pred_region
          %s192 = sand.u32 %s15, 1
          %s193 = scalar_lea.sflag [#allocation8], %s192
          %s194 = sand.u32 %s63, 1
          %s195 = smul.addr %s194, 8
          %s196 = scalar_lea.vmem [#allocation7], %s195
          %s197 = smul.u32 2, %s22
          %199 = vsyncadd %s193, 0
          %s200 = smul.addr %s197, 4
          %s201 = scalar_lea.hbm %s1, %s200
          %s202 = sshll.u32 %s201, 4
          %s203 = int_to_ptr.hbm [resolvable:$true] %s202
          %s204 = sshll.u32 %s196, 4
          %s205 = int_to_ptr.vmem [resolvable:$true] %s204
          %210 = dma.hbm_to_vmem [thread:$0]  %s203, 128, %s205, %s193, 64, 64, 4
        $region28: #{tpu_custom_call.1} parent=19 // pred_fallthru
          _
      $region20: #{tpu_custom_call.1} parent=5 // pred_fallthru
        _
      %p211 = scmp.le.s32.totalorder 1, %s15
      %p212 = scmp.lt.s32.totalorder %s15, 3
      %p213 = pnand %p211, %p212
      %p214 = pneg %p213
      // Predicated region
      $region29: #{tpu_custom_call.1} parent=5 // pred_check
        _
      $region30: #{tpu_custom_call.1} parent=5 // pred_check_branch
        %216 = sbr.rel (%p213) target = $region32
      $region31: #{tpu_custom_call.1} parent=5 // pred_region
        %s217 = ssub.s32 %s15, 1
        %s218 = sand.u32 %s40, 1
        %s219 = scalar_lea.sflag [#allocation6], %s218
        %s220 = sand.u32 %s40, 1
        %s221 = smul.addr %s220, 8
        %s222 = scalar_lea.vmem [#allocation5], %s221
        // Predicated region
        $region33: #{tpu_custom_call.1} parent=31 // pred_check
          %p223 = pneg %p53
        $region34: #{tpu_custom_call.1} parent=31 // pred_check_branch
          %225 = sbr.rel (%p223) target = $region36
        $region35: #{tpu_custom_call.1} parent=31 // pred_region
          %227 = dma.done %s219, 128
        $region36: #{tpu_custom_call.1} parent=31 // pred_fallthru
          _
        %s228 = sand.u32 %s20, 1
        %s229 = scalar_lea.sflag [#allocation8], %s228
        %s230 = sand.u32 %s66, 1
        %s231 = smul.addr %s230, 8
        %s232 = scalar_lea.vmem [#allocation7], %s231
        // Predicated region
        $region37: #{tpu_custom_call.1} parent=31 // pred_check
          %p233 = pneg %p79
        $region38: #{tpu_custom_call.1} parent=31 // pred_check_branch
          %235 = sbr.rel (%p233) target = $region40
        $region39: #{tpu_custom_call.1} parent=31 // pred_region
          %237 = dma.done %s229, 128
        $region40: #{tpu_custom_call.1} parent=31 // pred_fallthru
          _
        // Predicated region
        $region41: #{tpu_custom_call.1} parent=31 // pred_check
          %p238 = pneg %p105
        $region42: #{tpu_custom_call.1} parent=31 // pred_check_branch
          %240 = sbr.rel (%p238) target = $region44
        $region43: #{tpu_custom_call.1} parent=31 // pred_region
          %242 = dma.done [#allocation8], 384
        $region44: #{tpu_custom_call.1} parent=31 // pred_fallthru
          _
        %s243 = sand.u32 %s40, 1
        %s244 = scalar_lea.sflag [#allocation6], %s243
        %s245 = sand.u32 %s40, 1
        %s246 = smul.addr %s245, 8
        %s247 = scalar_lea.vmem [#allocation5], %s246
        %p248 = pneg %p53
        %p249 = pneg %p50
        %s250 = sand.u32 %s20, 1
        %s251 = scalar_lea.sflag [#allocation8], %s250
        %s252 = sand.u32 %s66, 1
        %s253 = smul.addr %s252, 8
        %s254 = scalar_lea.vmem [#allocation7], %s253
        %p255 = pneg %p79
        %p256 = pneg %p76
        %p257 = pneg %p105
        %p258 = pneg %p102
        %p259 = pneg %p131
        %p260 = pneg %p128
        %s261 = smul.u32 2, %s24
        %p262 = scmp.lt.s32.totalorder %s261, 3
        %s263 = scalar_select %p262, %s261, 3
        %s264 = smul.addr %s263, 8
        %s265 = scalar_lea.vmem %s3, %s264
        %s266 = smul.u32 2, %s24
        %s267 = smul.u32 2, %s24
        %s268 = smul.u32 6, %s25
        %s269 = smul.u32 2, %s24
        %p270 = scmp.lt.s32.totalorder %s269, 3
        %s271 = scalar_select %p270, %s269, 3
        %s272 = smul.addr %s271, 8
        %s273 = scalar_lea.vmem %s3, %s272
        %s274 = smul.u32 2, %s24
        %p276 = scmp.eq.s32.totalorder %s25, 0
        // Predicated region
        $region45: #{tpu_custom_call.1} parent=31 // pred_check
          %p277 = pneg %p276
        $region46: #{tpu_custom_call.1} parent=31 // pred_check_branch
          %279 = sbr.rel (%p277) target = $region48
        $region47: #{tpu_custom_call.1} parent=31 // pred_region
          %v280 = vld [vmem:[%s222] sm:$0xf]
          %v281 = vld [vmem:[%s222 + $0x4] sm:$0xf]
          %v282 = vunpack.c.l.bf16 %v280
          %v283 = vunpack.c.l.bf16 %v281
          %v284 = vld [vmem:[%s232] sm:$0xf]
          %v285 = vld [vmem:[%s232 + $0x4] sm:$0xf]
          %v286 = vunpack.c.l.bf16 %v284
          %v287 = vunpack.c.l.bf16 %v285
          %v288 = vmul.f32 %v282, %v286
          %v289 = vmul.f32 %v283, %v287
          %290 = vadd.xlane.f32.xlu0 %v288
          %v291 = vpop.xlane.xlu0 %290
          %292 = vadd.xlane.f32.xlu0 %v289
          %v293 = vpop.xlane.xlu0 %292
          %vm294 = vcmask 7168
          %295 = vst.msk [vmem:[#allocation4] sm:$0xff] %vm294, %v291
          %296 = vst.msk [vmem:[#allocation4 + $0x8] sm:$0xff] %vm294, %v293
          %297 = vst.msk [vmem:[#allocation2] sm:$0xff] %vm294, -1e+30
          %298 = vst.msk [vmem:[#allocation2 + $0x8] sm:$0xff] %vm294, -1e+30
          %299 = vst.msk [vmem:[#allocation3] sm:$0xff] %vm294, 0.0
          %300 = vst.msk [vmem:[#allocation3 + $0x8] sm:$0xff] %vm294, 0.0
        $region48: #{tpu_custom_call.1} parent=31 // pred_fallthru
          _
        %v301 = vld [vmem:[%s222] sm:$0xf]
        %v302 = vld [vmem:[%s222 + $0x4] sm:$0xf]
        %v303 = vld [vmem:[#allocation9] sm:$0xf]
        %v304 = vld [vmem:[#allocation9 + $0x4] sm:$0xf]
        %v305 = vld [vmem:[#allocation9 + $0x8] sm:$0xf]
        %v306 = vld [vmem:[#allocation9 + $0xc] sm:$0xf]
        %v307 = vld [vmem:[#allocation9 + $0x10] sm:$0xf]
        %v308 = vld [vmem:[#allocation9 + $0x14] sm:$0xf]
        %v311 = vunpack.c.l.b16 %v301
        %v312 = vunpack.c.l.b16 %v302
        %v313 = vpack.c.b16 %v312, %v311
        %v321 = vunpack.c.l.b16 %v303
        %v322 = vunpack.c.l.b16 %v304
        %v323 = vunpack.c.l.b16 %v305
        %v324 = vunpack.c.l.b16 %v306
        %v325 = vunpack.c.l.b16 %v307
        %v326 = vunpack.c.l.b16 %v308
        %v327 = vpack.c.b16 %v322, %v321
        %v328 = vpack.c.b16 %v324, %v323
        %v329 = vpack.c.b16 %v326, %v325
        %333 = vmatpush.bf16.xpose.msra.mxu0 0
        %334 = vmatpush.bf16.xpose.msra.mxu0 0
        %335 = vmatpush.bf16.xpose.msra.mxu0 0
        %336 = vmatpush.bf16.xpose.msra.mxu0 0
        %337 = vmatpush.bf16.xpose.msra.mxu0 0
        %338 = vmatpush.bf16.xpose.msra.mxu0 %v329
        %339 = vmatpush.bf16.xpose.msra.mxu0 %v328
        %340 = vmatpush.bf16.xpose.msra.mxu0 %v327
        %341 = vmatmul.bf16.gmra.mxu0 %v313
        %v342 = vpop.f32.mrf.mxu0
        %v343 = vadd.f32 0.0, %v342
        %v344 = vpop.f32.mrf.mxu0
        %v345 = vadd.f32 0.0, %v344
        %346 = vdwg.mxu0
        %v347 = vld [vmem:[#allocation2] sm:$0xff]
        %v348 = vld [vmem:[#allocation2 + $0x8] sm:$0xff]
        %vm349 = vcmask 392192
        %v350 = vsel %vm349, %v343, -inf
        %351 = vmax.xlane.f32.xlu0 %v350
        %v352 = vpop.xlane.xlu0 %351
        %v353 = vsel %vm349, %v345, -inf
        %354 = vmax.xlane.f32.xlu0 %v353
        %v355 = vpop.xlane.xlu0 %354
        %v356 = vmax.f32 %v347, %v352
        %v357 = vmax.f32 %v348, %v355
        %v358 = vsub.f32 %v347, %v356
        %v359 = vsub.f32 %v348, %v357
        %v360 = vmul.f32 %v358, 1.442695
        %v361 = vpow.pop %v360
        %v362 = vmul.f32 %v359, 1.442695
        %v363 = vpow.pop %v362
        %v364 = vld [vmem:[#allocation3] sm:$0xff]
        %v365 = vld [vmem:[#allocation3 + $0x8] sm:$0xff]
        %v366 = vmul.f32 %v361, %v364
        %v367 = vmul.f32 %v363, %v365
        %369 = vset.pattern.permute.xlu0 0
        %370 = vperm.xlu0 %369, %v356
        %v371 = vpop.permute.xlu0 %370
        %374 = vset.pattern.permute.xlu0 0
        %375 = vperm.xlu0 %374, %v357
        %v376 = vpop.permute.xlu0 %375
        %v378 = vsub.f32 %v343, %v371
        %v379 = vsub.f32 %v345, %v376
        %v380 = vmul.f32 %v378, 1.442695
        %v381 = vpow.pop %v380
        %v382 = vmul.f32 %v379, 1.442695
        %v383 = vpow.pop %v382
        %v384 = vsel %vm349, %v381, 0.0
        %385 = vadd.xlane.f32.xlu0 %v384
        %v386 = vpop.xlane.xlu0 %385
        %v387 = vsel %vm349, %v383, 0.0
        %388 = vadd.xlane.f32.xlu0 %v387
        %v389 = vpop.xlane.xlu0 %388
        %v390 = vadd.f32 %v366, %v386
        %v391 = vadd.f32 %v367, %v389
        %vm392 = vcmask 7168
        %393 = vst.msk [vmem:[#allocation3] sm:$0xff] %vm392, %v390
        %394 = vst.msk [vmem:[#allocation3 + $0x8] sm:$0xff] %vm392, %v391
        %395 = vst.msk [vmem:[#allocation2] sm:$0xff] %vm392, %v356
        %396 = vst.msk [vmem:[#allocation2 + $0x8] sm:$0xff] %vm392, %v357
        // Predicated region
        $region49: #{tpu_custom_call.1} parent=31 // pred_check
          %p397 = pneg %p276
        $region50: #{tpu_custom_call.1} parent=31 // pred_check_branch
          %399 = sbr.rel (%p397) target = $region52
        $region51: #{tpu_custom_call.1} parent=31 // pred_region
          %v400 = vld [vmem:[#allocation4] sm:$0xff]
          %v401 = vld [vmem:[#allocation4 + $0x8] sm:$0xff]
          %v402 = vld [vmem:[#allocation2] sm:$0xff]
          %v403 = vld [vmem:[#allocation2 + $0x8] sm:$0xff]
          %v404 = vmax.f32 %v402, %v400
          %v405 = vmax.f32 %v403, %v401
          %v406 = vsub.f32 %v402, %v404
          %v407 = vsub.f32 %v403, %v405
          %v408 = vmul.f32 %v406, 1.442695
          %v409 = vpow.pop %v408
          %v410 = vmul.f32 %v407, 1.442695
          %v411 = vpow.pop %v410
          %v412 = vld [vmem:[#allocation3] sm:$0xff]
          %v413 = vld [vmem:[#allocation3 + $0x8] sm:$0xff]
          %v414 = vmul.f32 %v409, %v412
          %v415 = vmul.f32 %v411, %v413
          %v416 = vsub.f32 %v400, %v404
          %v417 = vsub.f32 %v401, %v405
          %v418 = vmul.f32 %v416, 1.442695
          %v419 = vpow.pop %v418
          %v420 = vmul.f32 %v417, 1.442695
          %v421 = vpow.pop %v420
          %v422 = vadd.f32 %v414, %v419
          %v423 = vadd.f32 %v415, %v421
          %v424 = vlog2.pop %v422
          %v425 = vmul.f32 %v424, 0.6931472
          %v426 = vlog2.pop %v423
          %v427 = vmul.f32 %v426, 0.6931472
          %v428 = vadd.f32 %v404, %v425
          %v429 = vadd.f32 %v405, %v427
          %v430 = vsub.f32 %v428, %v400
          %v431 = vsub.f32 %v429, %v401
          %432 = vst.msk [vmem:[%s273] sm:$0xff] %vm392, %v430
          %433 = vst.msk [vmem:[%s273 + $0x8] sm:$0xff] %vm392, %v431
        $region52: #{tpu_custom_call.1} parent=31 // pred_fallthru
          _
        %s434 = smul.u32 2, %s24
        %p435 = scmp.lt.s32.totalorder %s434, 3
        %s436 = scalar_select %p435, %s434, 3
        %s437 = smul.addr %s436, 8
        %s438 = scalar_lea.vmem %s3, %s437
        // Predicated region
        $region53: #{tpu_custom_call.1} parent=31 // pred_check
          %p439 = pneg %p128
        $region54: #{tpu_custom_call.1} parent=31 // pred_check_branch
          %441 = sbr.rel (%p439) target = $region56
        $region55: #{tpu_custom_call.1} parent=31 // pred_region
          %s442 = smul.u32 2, %s24
        $region56: #{tpu_custom_call.1} parent=31 // pred_fallthru
          _
      $region32: #{tpu_custom_call.1} parent=5 // pred_fallthru
        _
      %p443 = scmp.le.s32.totalorder 2, %s15
      // Predicated region
      $region57: #{tpu_custom_call.1} parent=5 // pred_check
        %p444 = pneg %p443
      $region58: #{tpu_custom_call.1} parent=5 // pred_check_branch
        %446 = sbr.rel (%p444) target = $region60
      $region59: #{tpu_custom_call.1} parent=5 // pred_region
        %s447 = ssub.s32 %s15, 2
        // Predicated region
        $region61: #{tpu_custom_call.1} parent=59 // pred_check
          %p448 = pneg %p134
        $region62: #{tpu_custom_call.1} parent=59 // pred_check_branch
          %450 = sbr.rel (%p448) target = $region64
        $region63: #{tpu_custom_call.1} parent=59 // pred_region
          %s451 = smul.u32 2, %s26
          %p452 = scmp.lt.s32.totalorder %s451, 3
          %s453 = scalar_select %p452, %s451, 3
          %s454 = smul.addr %s453, 8
          %s455 = scalar_lea.vmem %s3, %s454
        $region64: #{tpu_custom_call.1} parent=59 // pred_fallthru
          _
      $region60: #{tpu_custom_call.1} parent=5 // pred_fallthru
        _
    $region6: #{tpu_custom_call.1} parent=1 // loop_footer
      %s19 = sadd.s32 1, %s15
    $region7: #{tpu_custom_call.1} parent=1 // loop_footer_branch
      %14 = sbr.rel target = $region3
    $region8: #{tpu_custom_call.1} parent=1 // loop_exit
      _
    %456 = vsyncpa [#allocation6], 1
    %s457 = scalar_lea.sflag [#allocation6], 1
    %458 = vsyncpa %s457, 1
    %459 = vsyncpa [#allocation8], 1
    %s460 = scalar_lea.sflag [#allocation8], 1
    %461 = vsyncpa %s460, 1

</llo_original>
